<compile_context>
chip_gen: v6e
topology: v6e:2x2x1
jax: 0.10.0
libtpu: 0.0.40
codegen_flags: <defaults>
</compile_context>

<pallas_src>
import jax
import jax.numpy as jnp
from jax.experimental import pallas as pl
from jax.experimental.pallas import tpu as pltpu


def _round_up(x, m):
    return (x + m - 1) // m * m


def _encoder_kernel(x_ref, w1_ref, b1_ref, w2_ref, b2_ref, w3_ref, b3_ref, o_ref):
    x = x_ref[...]  # (TB, 2) f32 (cast done in wrapper)

    # fc1: K=2 contraction -> two VPU broadcast FMAs (keeps the MXU free for fc2/fc3).
    h1 = (x[:, 0:1] * w1_ref[0:1, :]
          + x[:, 1:2] * w1_ref[1:2, :]
          + b1_ref[...])
    h1 = jnp.maximum(h1, 0.0)

    # fc2: MXU matmul, f32 accumulation; bias + ReLU on the VPU in f32.
    h2 = jnp.dot(h1.astype(w2_ref.dtype), w2_ref[...],
                 preferred_element_type=jnp.float32) + b2_ref[...]
    h2 = jnp.maximum(h2, 0.0)

    # fc3: MXU matmul, f32 accumulation; bias add in f32.
    h3 = jnp.dot(h2.astype(w3_ref.dtype), w3_ref[...],
                 preferred_element_type=jnp.float32) + b3_ref[...]
    o_ref[...] = h3.astype(o_ref.dtype)


def num_location_encoder(latlongs, params, *, use_bf16_mxu=False, batch_tile=256):
    """Fused forward pass of NumLocationEncoder (entity branch).

    latlongs: [B, 2] array.
    params: dict with w1 (2, L), b1 (L,), w2 (L, 2L), b2 (2L,), w3 (2L, 2L), b3 (2L,)
    use_bf16_mxu: store fc2/fc3 weights in bf16 (faster MXU path on v6e/v7x); f32 accum.
    returns: [B, 2L] float32
    """
    B = latlongs.shape[0]
    w1, b1 = params["w1"], params["b1"]
    w2, b2 = params["w2"], params["b2"]
    w3, b3 = params["w3"], params["b3"]

    L = w1.shape[1]           # max_loc
    H = w3.shape[1]           # 2 * max_loc
    Lp = _round_up(L, 128)
    Hp = _round_up(H, 128)

    # Lane-dense zero padding of feature dims; padded columns stay zero end-to-end.
    w1p = jnp.zeros((2, Lp), jnp.float32).at[:, :L].set(w1.astype(jnp.float32))
    b1p = jnp.zeros((1, Lp), jnp.float32).at[:, :L].set(b1.astype(jnp.float32))
    w2p = jnp.zeros((Lp, Hp), jnp.float32).at[:L, :H].set(w2.astype(jnp.float32))
    b2p = jnp.zeros((1, Hp), jnp.float32).at[:, :H].set(b2.astype(jnp.float32))
    w3p = jnp.zeros((Hp, Hp), jnp.float32).at[:H, :H].set(w3.astype(jnp.float32))
    b3p = jnp.zeros((1, Hp), jnp.float32).at[:, :H].set(b3.astype(jnp.float32))

    if use_bf16_mxu:
        w2p = w2p.astype(jnp.bfloat16)
        w3p = w3p.astype(jnp.bfloat16)

    # Batch tiling: pad B so every grid step processes a full tile (tail handled by pad).
    TB = batch_tile if B >= batch_tile else max(8, _round_up(B, 8))
    B_pad = _round_up(B, TB)
    x = jnp.zeros((B_pad, 2), jnp.float32).at[:B, :].set(latlongs.astype(jnp.float32))

    resident = lambda shape: pl.BlockSpec(shape, lambda i: (0, 0))

    out = pl.pallas_call(
        _encoder_kernel,
        out_shape=jax.ShapeDtypeStruct((B_pad, Hp), jnp.float32),
        grid=(B_pad // TB,),
        in_specs=[
            pl.BlockSpec((TB, 2), lambda i: (i, 0)),   # batch-tiled input
            resident(w1p.shape),                       # weights/biases stay VMEM-resident
            resident(b1p.shape),
            resident(w2p.shape),
            resident(b2p.shape),
            resident(w3p.shape),
            resident(b3p.shape),
        ],
        out_specs=pl.BlockSpec((TB, Hp), lambda i: (i, 0)),
        compiler_params=pltpu.CompilerParams(
            dimension_semantics=("parallel",)),
    )(x, w1p, b1p, w2p, b2p, w3p, b3p)

    return out[:B, :H]


def init_params(key, max_loc):
    """Deterministic synthetic parameters matching nn.Linear shapes (transposed to (in, out))."""
    ks = jax.random.split(key, 6)

    def lin(kw, kb, fan_in, fan_out):
        bound = 1.0 / jnp.sqrt(fan_in)
        w = jax.random.uniform(kw, (fan_in, fan_out), jnp.float32, -bound, bound)
        b = jax.random.uniform(kb, (fan_out,), jnp.float32, -bound, bound)
        return w, b

    w1, b1 = lin(ks[0], ks[1], 2, max_loc)
    w2, b2 = lin(ks[2], ks[3], max_loc, 2 * max_loc)
    w3, b3 = lin(ks[4], ks[5], 2 * max_loc, 2 * max_loc)
    return {"w1": w1, "b1": b1, "w2": w2, "b2": b2, "w3": w3, "b3": b3}


def reference_forward(latlongs, p):
    x = latlongs.astype(jnp.float32)
    x = jnp.maximum(x @ p["w1"] + p["b1"], 0.0)
    x = jnp.maximum(x @ p["w2"] + p["b2"], 0.0)
    return x @ p["w3"] + p["b3"]


if __name__ == "__main__":
    key = jax.random.PRNGKey(0)
    k_param, k_data = jax.random.split(key)

    max_loc = 32          # options.max_locs
    batch = 8             # small batch of (lat, long) pairs

    params = init_params(k_param, max_loc)
    latlongs = jax.random.uniform(k_data, (batch, 2), jnp.float32, -90.0, 90.0)

    out = num_location_encoder(latlongs, params)
    out = jax.block_until_ready(out)

    ref = reference_forward(latlongs, params)
    assert out.shape == (batch, 2 * max_loc), out.shape
    assert jnp.allclose(out, ref, atol=1e-4, rtol=1e-4), "mismatch vs reference"

    print("KERNEL_OK")
</pallas_src>

<mosaic_0001>
module attributes {stable_mosaic.version = 11 : i64} {
  func.func @_encoder_kernel(%arg0: i32, %arg1: memref<8x2xf32, #tpu.memory_space<vmem>>, %arg2: memref<2x128xf32, #tpu.memory_space<vmem>>, %arg3: memref<1x128xf32, #tpu.memory_space<vmem>>, %arg4: memref<128x128xf32, #tpu.memory_space<vmem>>, %arg5: memref<1x128xf32, #tpu.memory_space<vmem>>, %arg6: memref<128x128xf32, #tpu.memory_space<vmem>>, %arg7: memref<1x128xf32, #tpu.memory_space<vmem>>, %arg8: memref<8x128xf32, #tpu.memory_space<vmem>>) attributes {dimension_semantics = [#tpu.dimension_semantics<parallel>], iteration_bounds = array<i64: 1>, scalar_prefetch = 0 : i64, scratch_operands = 0 : i64, tpu.core_type = #tpu.core_type<tc>, window_params = [{transform_indices = @transform_0, window_bounds = array<i64: 8, 2>}, {pipeline_mode = #tpu.pipeline_mode<synchronous>, transform_indices = @transform_1, window_bounds = array<i64: 2, 128>}, {pipeline_mode = #tpu.pipeline_mode<synchronous>, transform_indices = @transform_2, window_bounds = array<i64: 1, 128>}, {pipeline_mode = #tpu.pipeline_mode<synchronous>, transform_indices = @transform_3, window_bounds = array<i64: 128, 128>}, {pipeline_mode = #tpu.pipeline_mode<synchronous>, transform_indices = @transform_4, window_bounds = array<i64: 1, 128>}, {pipeline_mode = #tpu.pipeline_mode<synchronous>, transform_indices = @transform_5, window_bounds = array<i64: 128, 128>}, {pipeline_mode = #tpu.pipeline_mode<synchronous>, transform_indices = @transform_6, window_bounds = array<i64: 1, 128>}, {transform_indices = @transform_7, window_bounds = array<i64: 8, 128>}]} {
    %c0 = arith.constant 0 : index
    %c0_0 = arith.constant 0 : index
    %0 = vector.load %arg1[%c0, %c0_0] : memref<8x2xf32, #tpu.memory_space<vmem>>, vector<8x2xf32>
    %1 = vector.extract_strided_slice %0 {offsets = [0, 0], sizes = [8, 1], strides = [1, 1]} : vector<8x2xf32> to vector<8x1xf32>
    %c0_1 = arith.constant 0 : index
    %c0_2 = arith.constant 0 : index
    %2 = vector.load %arg2[%c0_1, %c0_2] : memref<2x128xf32, #tpu.memory_space<vmem>>, vector<1x128xf32>
    %3 = vector.broadcast %1 : vector<8x1xf32> to vector<8x128xf32>
    %4 = vector.broadcast %2 : vector<1x128xf32> to vector<8x128xf32>
    %5 = arith.mulf %3, %4 : vector<8x128xf32>
    %6 = vector.extract_strided_slice %0 {offsets = [0, 1], sizes = [8, 1], strides = [1, 1]} : vector<8x2xf32> to vector<8x1xf32>
    %c1 = arith.constant 1 : index
    %c0_3 = arith.constant 0 : index
    %7 = vector.load %arg2[%c1, %c0_3] : memref<2x128xf32, #tpu.memory_space<vmem>>, vector<1x128xf32>
    %8 = vector.broadcast %6 : vector<8x1xf32> to vector<8x128xf32>
    %9 = vector.broadcast %7 : vector<1x128xf32> to vector<8x128xf32>
    %10 = arith.mulf %8, %9 : vector<8x128xf32>
    %11 = arith.addf %5, %10 : vector<8x128xf32>
    %c0_4 = arith.constant 0 : index
    %c0_5 = arith.constant 0 : index
    %12 = vector.load %arg3[%c0_4, %c0_5] : memref<1x128xf32, #tpu.memory_space<vmem>>, vector<1x128xf32>
    %13 = vector.broadcast %12 : vector<1x128xf32> to vector<8x128xf32>
    %14 = arith.addf %11, %13 : vector<8x128xf32>
    %cst = arith.constant 0.000000e+00 : f32
    %15 = vector.broadcast %cst : f32 to vector<8x128xf32>
    %16 = arith.maximumf %14, %15 : vector<8x128xf32>
    %c0_6 = arith.constant 0 : index
    %c0_7 = arith.constant 0 : index
    %17 = vector.load %arg4[%c0_6, %c0_7] : memref<128x128xf32, #tpu.memory_space<vmem>>, vector<128x128xf32>
    %cst_8 = arith.constant dense<0.000000e+00> : vector<8x128xf32>
    %18 = tpu.matmul %16, %17, %cst_8 {dimension_numbers = #tpu.dot_dimension_numbers<[1], [0], [0], [1], [0, 0, 1, 1], [], []>} : vector<8x128xf32>, vector<128x128xf32>, vector<8x128xf32> -> vector<8x128xf32>
    %c0_9 = arith.constant 0 : index
    %c0_10 = arith.constant 0 : index
    %19 = vector.load %arg5[%c0_9, %c0_10] : memref<1x128xf32, #tpu.memory_space<vmem>>, vector<1x128xf32>
    %20 = vector.broadcast %19 : vector<1x128xf32> to vector<8x128xf32>
    %21 = arith.addf %18, %20 : vector<8x128xf32>
    %cst_11 = arith.constant 0.000000e+00 : f32
    %22 = vector.broadcast %cst_11 : f32 to vector<8x128xf32>
    %23 = arith.maximumf %21, %22 : vector<8x128xf32>
    %c0_12 = arith.constant 0 : index
    %c0_13 = arith.constant 0 : index
    %24 = vector.load %arg6[%c0_12, %c0_13] : memref<128x128xf32, #tpu.memory_space<vmem>>, vector<128x128xf32>
    %cst_14 = arith.constant dense<0.000000e+00> : vector<8x128xf32>
    %25 = tpu.matmul %23, %24, %cst_14 {dimension_numbers = #tpu.dot_dimension_numbers<[1], [0], [0], [1], [0, 0, 1, 1], [], []>} : vector<8x128xf32>, vector<128x128xf32>, vector<8x128xf32> -> vector<8x128xf32>
    %c0_15 = arith.constant 0 : index
    %c0_16 = arith.constant 0 : index
    %26 = vector.load %arg7[%c0_15, %c0_16] : memref<1x128xf32, #tpu.memory_space<vmem>>, vector<1x128xf32>
    %27 = vector.broadcast %26 : vector<1x128xf32> to vector<8x128xf32>
    %28 = arith.addf %25, %27 : vector<8x128xf32>
    %c0_17 = arith.constant 0 : index
    %c0_18 = arith.constant 0 : index
    %29 = vector.load %arg8[%c0_17, %c0_18] : memref<8x128xf32, #tpu.memory_space<vmem>>, vector<8x128xf32>
    tpu.vector_store %arg8[%c0_17, %c0_18], %28 {strides = array<i32>} : memref<8x128xf32, #tpu.memory_space<vmem>>, vector<8x128xf32>,
    return
  }
  func.func @transform_0(%arg0: i32) -> (i32, i32) {
    %c0_i32 = arith.constant 0 : i32
    %c0_i32_0 = arith.constant 0 : i32
    return %arg0, %c0_i32 : i32, i32
  }
  func.func @transform_1(%arg0: i32) -> (i32, i32) {
    %c0_i32 = arith.constant 0 : i32
    %c0_i32_0 = arith.constant 0 : i32
    %c0_i32_1 = arith.constant 0 : i32
    return %c0_i32, %c0_i32_0 : i32, i32
  }
  func.func @transform_2(%arg0: i32) -> (i32, i32) {
    %c0_i32 = arith.constant 0 : i32
    %c0_i32_0 = arith.constant 0 : i32
    %c0_i32_1 = arith.constant 0 : i32
    return %c0_i32, %c0_i32_0 : i32, i32
  }
  func.func @transform_3(%arg0: i32) -> (i32, i32) {
    %c0_i32 = arith.constant 0 : i32
    %c0_i32_0 = arith.constant 0 : i32
    %c0_i32_1 = arith.constant 0 : i32
    return %c0_i32, %c0_i32_0 : i32, i32
  }
  func.func @transform_4(%arg0: i32) -> (i32, i32) {
    %c0_i32 = arith.constant 0 : i32
    %c0_i32_0 = arith.constant 0 : i32
    %c0_i32_1 = arith.constant 0 : i32
    return %c0_i32, %c0_i32_0 : i32, i32
  }
  func.func @transform_5(%arg0: i32) -> (i32, i32) {
    %c0_i32 = arith.constant 0 : i32
    %c0_i32_0 = arith.constant 0 : i32
    %c0_i32_1 = arith.constant 0 : i32
    return %c0_i32, %c0_i32_0 : i32, i32
  }
  func.func @transform_6(%arg0: i32) -> (i32, i32) {
    %c0_i32 = arith.constant 0 : i32
    %c0_i32_0 = arith.constant 0 : i32
    %c0_i32_1 = arith.constant 0 : i32
    return %c0_i32, %c0_i32_0 : i32, i32
  }
  func.func @transform_7(%arg0: i32) -> (i32, i32) {
    %c0_i32 = arith.constant 0 : i32
    %c0_i32_0 = arith.constant 0 : i32
    return %arg0, %c0_i32 : i32, i32
  }
}

</mosaic_0001>

<llo_original>
// kernel: tpu_custom_call.1
$region0: #{tpu_custom_call.1}
  #allocation0 [shape = 'u32[]', space=smem, size = 0x4, offset = 0x4, fixed_abs, tag = 'smem constant byte address 0x4 - core index']
  #allocation1 [shape = 'u32[144,128]{1,0:T(1,128)}', space=vmem, size = 0x12000, scoped, tag = 'internal scratch']
  %s0 = inlined_call_operand.vmem [shape: f32[8,2], index: 0, kind: input, shape index: {}]
  %s1 = inlined_call_operand.vmem [shape: f32[2,128], index: 1, kind: input, shape index: {}]
  %s2 = inlined_call_operand.vmem [shape: f32[1,128], index: 2, kind: input, shape index: {}]
  %s3 = inlined_call_operand.hbm [shape: f32[128,128], index: 3, kind: input, shape index: {}]
  %s4 = inlined_call_operand.vmem [shape: f32[1,128], index: 4, kind: input, shape index: {}]
  %s5 = inlined_call_operand.hbm [shape: f32[128,128], index: 5, kind: input, shape index: {}]
  %s6 = inlined_call_operand.vmem [shape: f32[1,128], index: 6, kind: input, shape index: {}]
  %s7 = inlined_call_operand.hbm [shape: f32[8,128], index: 7, kind: output, shape index: {}]
  %s8 = sld [smem:[#allocation0]]
  $region46: #{tpu_custom_call.1} parent=0
    _
  %s10 = ssub.s32 1, %s8
  %s11 = scalar_select 0, %s10, %s8
  $region1: #{tpu_custom_call.1} parent=0
    #allocation2 [shape = 'u8[65536]{0}', space=vmem, size = 0x10000, scoped, tag = 'input window, operand 3, single buffered']
    #allocation3 [shape = 's32[1]{0}', space=sflag, size = 0x4, scoped, tag = 'scoped memory for tpu_custom_call.1']
    #allocation4 [shape = 's32[1]{0}', space=sflag, size = 0x4, scoped, tag = 'scoped memory for tpu_custom_call.1']
    #allocation5 [shape = 'u8[65536]{0}', space=vmem, size = 0x10000, scoped, tag = 'input window, operand 5, single buffered']
    #allocation6 [shape = 's32[1]{0}', space=sflag, size = 0x4, scoped, tag = 'scoped memory for tpu_custom_call.1']
    #allocation7 [shape = 'u8[4096]{0}', space=vmem, size = 0x1000, scoped, tag = 'output window, operand 0, single buffered']
    %12 = vsyncpa [#allocation3], 0
    %13 = vsyncpa [#allocation6], 0
    %14 = vsyncpa [#allocation4], 0
    // Predicated region
    $region2: #{tpu_custom_call.1} parent=1 // pred_check
      _
    $region3: #{tpu_custom_call.1} parent=1 // pred_check_branch
      %16 = sbr.rel (0) target = $region5
    $region4: #{tpu_custom_call.1} parent=1 // pred_region
      _
    $region5: #{tpu_custom_call.1} parent=1 // pred_fallthru
      _
    // Predicated region
    $region6: #{tpu_custom_call.1} parent=1 // pred_check
      _
    $region7: #{tpu_custom_call.1} parent=1 // pred_check_branch
      %18 = sbr.rel (0) target = $region9
    $region8: #{tpu_custom_call.1} parent=1 // pred_region
      _
    $region9: #{tpu_custom_call.1} parent=1 // pred_fallthru
      _
    // Predicated region
    $region10: #{tpu_custom_call.1} parent=1 // pred_check
      _
    $region11: #{tpu_custom_call.1} parent=1 // pred_check_branch
      %20 = sbr.rel (0) target = $region13
    $region12: #{tpu_custom_call.1} parent=1 // pred_region
      _
    $region13: #{tpu_custom_call.1} parent=1 // pred_fallthru
      _
    // Predicated region
    $region14: #{tpu_custom_call.1} parent=1 // pred_check
      _
    $region15: #{tpu_custom_call.1} parent=1 // pred_check_branch
      %22 = sbr.rel (0) target = $region17
    $region16: #{tpu_custom_call.1} parent=1 // pred_region
      %s24 = ssub.s32 2048, 2048
      %25 = vsyncadd [#allocation3], %s24
      %s26 = sshll.u32 [#allocation2], 4
      %s27 = int_to_ptr.vmem [resolvable:$true] %s26
      %32 = dma.hbm_to_vmem [thread:$0]  %s3, 2048, %s27, [#allocation3], 128, 128, 8
    $region17: #{tpu_custom_call.1} parent=1 // pred_fallthru
      _
    // Predicated region
    $region18: #{tpu_custom_call.1} parent=1 // pred_check
      _
    $region19: #{tpu_custom_call.1} parent=1 // pred_check_branch
      %34 = sbr.rel (0) target = $region21
    $region20: #{tpu_custom_call.1} parent=1 // pred_region
      _
    $region21: #{tpu_custom_call.1} parent=1 // pred_fallthru
      _
    // Predicated region
    $region22: #{tpu_custom_call.1} parent=1 // pred_check
      _
    $region23: #{tpu_custom_call.1} parent=1 // pred_check_branch
      %36 = sbr.rel (0) target = $region25
    $region24: #{tpu_custom_call.1} parent=1 // pred_region
      %s38 = ssub.s32 2048, 2048
      %39 = vsyncadd [#allocation6], %s38
      %s40 = sshll.u32 [#allocation5], 4
      %s41 = int_to_ptr.vmem [resolvable:$true] %s40
      %46 = dma.hbm_to_vmem [thread:$0]  %s5, 2048, %s41, [#allocation6], 128, 128, 8
    $region25: #{tpu_custom_call.1} parent=1 // pred_fallthru
      _
    // Predicated region
    $region26: #{tpu_custom_call.1} parent=1 // pred_check
      _
    $region27: #{tpu_custom_call.1} parent=1 // pred_check_branch
      %48 = sbr.rel (0) target = $region29
    $region28: #{tpu_custom_call.1} parent=1 // pred_region
      _
    $region29: #{tpu_custom_call.1} parent=1 // pred_fallthru
      _
    // Predicated region
    $region30: #{tpu_custom_call.1} parent=1 // pred_check
      _
    $region31: #{tpu_custom_call.1} parent=1 // pred_check_branch
      %50 = sbr.rel (0) target = $region33
    $region32: #{tpu_custom_call.1} parent=1 // pred_region
      %51 = dma.done [#allocation3], 2048
    $region33: #{tpu_custom_call.1} parent=1 // pred_fallthru
      _
    // Predicated region
    $region34: #{tpu_custom_call.1} parent=1 // pred_check
      _
    $region35: #{tpu_custom_call.1} parent=1 // pred_check_branch
      %53 = sbr.rel (0) target = $region37
    $region36: #{tpu_custom_call.1} parent=1 // pred_region
      %54 = dma.done [#allocation6], 2048
    $region37: #{tpu_custom_call.1} parent=1 // pred_fallthru
      _
    %v55 = vld [vmem:[%s0] sm:$0xff]
    %v56 = vld [vmem:[%s1] sm:$0x1]
    %58 = vset.pattern.permute.xlu0 0
    %59 = vperm.xlu0 %58, %v55
    %v60 = vpop.permute.xlu0 %59
    %v62 = vlaneseq
    %v63 = vshrl.u32 %v62, 7
    %v64 = vsub.s32 0, %v63
    %v65 = vrot.slane %v56, %v64
    %v66 = vmul.f32 %v60, %v65
    %v67 = vld [vmem:[%s1 + $0x1] sm:$0x1]
    %68 = vset.pattern.permute.xlu0 1
    %69 = vperm.xlu0 %68, %v55
    %v70 = vpop.permute.xlu0 %69
    %v72 = vlaneseq
    %v73 = vshrl.u32 %v72, 7
    %v74 = vsub.s32 0, %v73
    %v75 = vrot.slane %v67, %v74
    %v76 = vmul.f32 %v70, %v75
    %v77 = vadd.f32 %v66, %v76
    %v78 = vld [vmem:[%s2] sm:$0x1]
    %v80 = vlaneseq
    %v81 = vshrl.u32 %v80, 7
    %v82 = vsub.s32 0, %v81
    %v83 = vrot.slane %v78, %v82
    %v85 = vadd.f32 %v77, %v83
    %v86 = vmax.f32 %v85, 0.0
    %v87 = vld [vmem:[#allocation2] sm:$0xff]
    %v88 = vld [vmem:[#allocation2 + $0x8] sm:$0xff]
    %v89 = vld [vmem:[#allocation2 + $0x10] sm:$0xff]
    %v90 = vld [vmem:[#allocation2 + $0x18] sm:$0xff]
    %v91 = vld [vmem:[#allocation2 + $0x20] sm:$0xff]
    %v92 = vld [vmem:[#allocation2 + $0x28] sm:$0xff]
    %v93 = vld [vmem:[#allocation2 + $0x30] sm:$0xff]
    %v94 = vld [vmem:[#allocation2 + $0x38] sm:$0xff]
    %v95 = vld [vmem:[#allocation2 + $0x40] sm:$0xff]
    %v96 = vld [vmem:[#allocation2 + $0x48] sm:$0xff]
    %v97 = vld [vmem:[#allocation2 + $0x50] sm:$0xff]
    %v98 = vld [vmem:[#allocation2 + $0x58] sm:$0xff]
    %v99 = vld [vmem:[#allocation2 + $0x60] sm:$0xff]
    %v100 = vld [vmem:[#allocation2 + $0x68] sm:$0xff]
    %v101 = vld [vmem:[#allocation2 + $0x70] sm:$0xff]
    %v102 = vld [vmem:[#allocation2 + $0x78] sm:$0xff]
    %v103 = vld [vmem:[%s4] sm:$0x1]
    %v105 = vlaneseq
    %v106 = vshrl.u32 %v105, 7
    %v107 = vsub.s32 0, %v106
    %v108 = vrot.slane %v103, %v107
    %110 = vmatprep.subr.mxu0 0.0
    %111 = vmatpush1.msra.mxu0 %v102
    %112 = vmatprep.subr.mxu0 0.0
    %113 = vmatpush1.msra.mxu0 %v101
    %114 = vmatprep.subr.mxu0 0.0
    %115 = vmatpush1.msra.mxu0 %v100
    %116 = vmatprep.subr.mxu0 0.0
    %117 = vmatpush1.msra.mxu0 %v99
    %118 = vmatprep.subr.mxu0 0.0
    %119 = vmatpush1.msra.mxu0 %v98
    %120 = vmatprep.subr.mxu0 0.0
    %121 = vmatpush1.msra.mxu0 %v97
    %122 = vmatprep.subr.mxu0 0.0
    %123 = vmatpush1.msra.mxu0 %v96
    %124 = vmatprep.subr.mxu0 0.0
    %125 = vmatpush1.msra.mxu0 %v95
    %126 = vmatprep.subr.mxu0 0.0
    %127 = vmatpush1.msra.mxu0 %v94
    %128 = vmatprep.subr.mxu0 0.0
    %129 = vmatpush1.msra.mxu0 %v93
    %130 = vmatprep.subr.mxu0 0.0
    %131 = vmatpush1.msra.mxu0 %v92
    %132 = vmatprep.subr.mxu0 0.0
    %133 = vmatpush1.msra.mxu0 %v91
    %134 = vmatprep.subr.mxu0 0.0
    %135 = vmatpush1.msra.mxu0 %v90
    %136 = vmatprep.subr.mxu0 0.0
    %137 = vmatpush1.msra.mxu0 %v89
    %138 = vmatprep.subr.mxu0 0.0
    %139 = vmatpush1.msra.mxu0 %v88
    %140 = vmatprep.subr.mxu0 0.0
    %141 = vmatpush1.msra.mxu0 %v87
    %142 = vmatprep.subr.mxu0 0.0
    %143 = vmatpush2.msra.mxu0 0.0
    %144 = vmatprep.subr.mxu0 0.0
    %145 = vmatpush2.msra.mxu0 0.0
    %146 = vmatprep.subr.mxu0 0.0
    %147 = vmatpush2.msra.mxu0 0.0
    %148 = vmatprep.subr.mxu0 0.0
    %149 = vmatpush2.msra.mxu0 0.0
    %150 = vmatprep.subr.mxu0 0.0
    %151 = vmatpush2.msra.mxu0 0.0
    %152 = vmatprep.subr.mxu0 0.0
    %153 = vmatpush2.msra.mxu0 0.0
    %154 = vmatprep.subr.mxu0 0.0
    %155 = vmatpush2.msra.mxu0 0.0
    %156 = vmatprep.subr.mxu0 0.0
    %157 = vmatpush2.msra.mxu0 0.0
    %158 = vmatprep.subr.mxu0 0.0
    %159 = vmatpush2.msra.mxu0 0.0
    %160 = vmatprep.subr.mxu0 0.0
    %161 = vmatpush2.msra.mxu0 0.0
    %162 = vmatprep.subr.mxu0 0.0
    %163 = vmatpush2.msra.mxu0 0.0
    %164 = vmatprep.subr.mxu0 0.0
    %165 = vmatpush2.msra.mxu0 0.0
    %166 = vmatprep.subr.mxu0 0.0
    %167 = vmatpush2.msra.mxu0 0.0
    %168 = vmatprep.subr.mxu0 0.0
    %169 = vmatpush2.msra.mxu0 0.0
    %170 = vmatprep.subr.mxu0 0.0
    %171 = vmatpush2.msra.mxu0 0.0
    %172 = vmatprep.subr.mxu0 0.0
    %173 = vmatpush2.msra.mxu0 0.0
    %174 = vmatprep.mubr.f32.mxu0 0.0
    %175 = vmatmul.mubr.f32.gmra.mxu0 %v86
    %v176 = vpop.f32.mrf.mxu0
    %v177 = vadd.f32 %v108, %v176
    %v178 = vpop.f32.mrf.mxu0
    %179 = vdwg.mxu0
    %v180 = vmax.f32 %v177, 0.0
    %v181 = vld [vmem:[#allocation5] sm:$0xff]
    %v182 = vld [vmem:[#allocation5 + $0x8] sm:$0xff]
    %v183 = vld [vmem:[#allocation5 + $0x10] sm:$0xff]
    %v184 = vld [vmem:[#allocation5 + $0x18] sm:$0xff]
    %v185 = vld [vmem:[#allocation5 + $0x20] sm:$0xff]
    %v186 = vld [vmem:[#allocation5 + $0x28] sm:$0xff]
    %v187 = vld [vmem:[#allocation5 + $0x30] sm:$0xff]
    %v188 = vld [vmem:[#allocation5 + $0x38] sm:$0xff]
    %v189 = vld [vmem:[#allocation5 + $0x40] sm:$0xff]
    %v190 = vld [vmem:[#allocation5 + $0x48] sm:$0xff]
    %v191 = vld [vmem:[#allocation5 + $0x50] sm:$0xff]
    %v192 = vld [vmem:[#allocation5 + $0x58] sm:$0xff]
    %v193 = vld [vmem:[#allocation5 + $0x60] sm:$0xff]
    %v194 = vld [vmem:[#allocation5 + $0x68] sm:$0xff]
    %v195 = vld [vmem:[#allocation5 + $0x70] sm:$0xff]
    %v196 = vld [vmem:[#allocation5 + $0x78] sm:$0xff]
    %v197 = vld [vmem:[%s6] sm:$0x1]
    %v199 = vlaneseq
    %v200 = vshrl.u32 %v199, 7
    %v201 = vsub.s32 0, %v200
    %v202 = vrot.slane %v197, %v201
    %204 = vmatprep.subr.mxu0 0.0
    %205 = vmatpush1.msra.mxu0 %v196
    %206 = vmatprep.subr.mxu0 0.0
    %207 = vmatpush1.msra.mxu0 %v195
    %208 = vmatprep.subr.mxu0 0.0
    %209 = vmatpush1.msra.mxu0 %v194
    %210 = vmatprep.subr.mxu0 0.0
    %211 = vmatpush1.msra.mxu0 %v193
    %212 = vmatprep.subr.mxu0 0.0
    %213 = vmatpush1.msra.mxu0 %v192
    %214 = vmatprep.subr.mxu0 0.0
    %215 = vmatpush1.msra.mxu0 %v191
    %216 = vmatprep.subr.mxu0 0.0
    %217 = vmatpush1.msra.mxu0 %v190
    %218 = vmatprep.subr.mxu0 0.0
    %219 = vmatpush1.msra.mxu0 %v189
    %220 = vmatprep.subr.mxu0 0.0
    %221 = vmatpush1.msra.mxu0 %v188
    %222 = vmatprep.subr.mxu0 0.0
    %223 = vmatpush1.msra.mxu0 %v187
    %224 = vmatprep.subr.mxu0 0.0
    %225 = vmatpush1.msra.mxu0 %v186
    %226 = vmatprep.subr.mxu0 0.0
    %227 = vmatpush1.msra.mxu0 %v185
    %228 = vmatprep.subr.mxu0 0.0
    %229 = vmatpush1.msra.mxu0 %v184
    %230 = vmatprep.subr.mxu0 0.0
    %231 = vmatpush1.msra.mxu0 %v183
    %232 = vmatprep.subr.mxu0 0.0
    %233 = vmatpush1.msra.mxu0 %v182
    %234 = vmatprep.subr.mxu0 0.0
    %235 = vmatpush1.msra.mxu0 %v181
    %236 = vmatprep.subr.mxu0 0.0
    %237 = vmatpush2.msra.mxu0 0.0
    %238 = vmatprep.subr.mxu0 0.0
    %239 = vmatpush2.msra.mxu0 0.0
    %240 = vmatprep.subr.mxu0 0.0
    %241 = vmatpush2.msra.mxu0 0.0
    %242 = vmatprep.subr.mxu0 0.0
    %243 = vmatpush2.msra.mxu0 0.0
    %244 = vmatprep.subr.mxu0 0.0
    %245 = vmatpush2.msra.mxu0 0.0
    %246 = vmatprep.subr.mxu0 0.0
    %247 = vmatpush2.msra.mxu0 0.0
    %248 = vmatprep.subr.mxu0 0.0
    %249 = vmatpush2.msra.mxu0 0.0
    %250 = vmatprep.subr.mxu0 0.0
    %251 = vmatpush2.msra.mxu0 0.0
    %252 = vmatprep.subr.mxu0 0.0
    %253 = vmatpush2.msra.mxu0 0.0
    %254 = vmatprep.subr.mxu0 0.0
    %255 = vmatpush2.msra.mxu0 0.0
    %256 = vmatprep.subr.mxu0 0.0
    %257 = vmatpush2.msra.mxu0 0.0
    %258 = vmatprep.subr.mxu0 0.0
    %259 = vmatpush2.msra.mxu0 0.0
    %260 = vmatprep.subr.mxu0 0.0
    %261 = vmatpush2.msra.mxu0 0.0
    %262 = vmatprep.subr.mxu0 0.0
    %263 = vmatpush2.msra.mxu0 0.0
    %264 = vmatprep.subr.mxu0 0.0
    %265 = vmatpush2.msra.mxu0 0.0
    %266 = vmatprep.subr.mxu0 0.0
    %267 = vmatpush2.msra.mxu0 0.0
    %268 = vmatprep.mubr.f32.mxu0 0.0
    %269 = vmatmul.mubr.f32.gmra.mxu0 %v180
    %v270 = vpop.f32.mrf.mxu0
    %v271 = vadd.f32 %v202, %v270
    %v272 = vpop.f32.mrf.mxu0
    %273 = vdwg.mxu0
    %274 = vst [vmem:[#allocation7] sm:$0xff] %v271
    // Predicated region
    $region38: #{tpu_custom_call.1} parent=1 // pred_check
      _
    $region39: #{tpu_custom_call.1} parent=1 // pred_check_branch
      %276 = sbr.rel (0) target = $region41
    $region40: #{tpu_custom_call.1} parent=1 // pred_region
      %s278 = ssub.s32 128, 128
      %279 = vsyncadd [#allocation4], %s278
      %s281 = sshll.u32 [#allocation7], 4
      %s282 = int_to_ptr.vmem [resolvable:$true] %s281
      %284 = dma.vmem_to_hbm [thread:$0]  %s282, 128, %s7, [#allocation4]
    $region41: #{tpu_custom_call.1} parent=1 // pred_fallthru
      _
    // Predicated region
    $region42: #{tpu_custom_call.1} parent=1 // pred_check
      _
    $region43: #{tpu_custom_call.1} parent=1 // pred_check_branch
      %286 = sbr.rel (0) target = $region45
    $region44: #{tpu_custom_call.1} parent=1 // pred_region
      %287 = dma.done [#allocation4], 128
    $region45: #{tpu_custom_call.1} parent=1 // pred_fallthru
      _
    %288 = vsyncpa [#allocation3], 1
    %289 = vsyncpa [#allocation6], 1
    %290 = vsyncpa [#allocation4], 1

</llo_original>
